<compile_context>
chip_gen: v7x
topology: tpu7x:2x2x1
jax: 0.10.0
libtpu: 0.0.40
codegen_flags: <defaults>
</compile_context>

<pallas_src>
import jax
import jax.numpy as jnp
from jax import lax
from jax.experimental import pallas as pl
from jax.experimental.pallas import tpu as pltpu

_EPS = 1e-5
_LANES = 128
_TILE_N = 512                     # rows per block in the two-pass path (mult. of 8)
_N_CHUNKS = 2                     # parallel row chunks in stats pass (v7x: 2 TCs)
_SINGLE_PASS_MAX_ROWS = 4096      # above this, switch to the bounded two-pass path
_SINGLE_PASS_VMEM_BUDGET = 12 * 1024 * 1024   # for the (N, tile_d) in/out blocks
_VMEM_LIMIT = 48 * 1024 * 1024                # safe on v5e/v6e (128 MiB) and v7x (64 MiB)


def _round_up(x, m):
    return (x + m - 1) // m * m


# ----------------------------- kernels --------------------------------------
def _seqbn_fused_kernel(x_ref, gamma_ref, beta_ref, o_ref):
    """Single-pass SeqBN: full N rows of one feature tile per grid step."""
    x = x_ref[...].astype(jnp.float32)
    inv_n = 1.0 / x.shape[0]
    mean = jnp.sum(x, axis=0, keepdims=True) * inv_n
    centered = x - mean
    var = jnp.sum(centered * centered, axis=0, keepdims=True) * inv_n  # biased
    # Fold affine into per-feature scale/shift -> y = x*scale + shift.
    scale = gamma_ref[...].astype(jnp.float32) * lax.rsqrt(var + _EPS)
    shift = beta_ref[...].astype(jnp.float32) - mean * scale
    o_ref[...] = (x * scale + shift).astype(o_ref.dtype)


def _stats_kernel(x_ref, sum_ref, sq_ref):
    """Pass 1: accumulate per-feature sum / sum-of-squares over row tiles."""
    # grid = (row chunk [parallel], d tile [parallel], row tile [arbitrary])
    @pl.when(pl.program_id(2) == 0)
    def _():
        sum_ref[...] = jnp.zeros_like(sum_ref)
        sq_ref[...] = jnp.zeros_like(sq_ref)

    x = x_ref[...].astype(jnp.float32)
    sum_ref[...] += jnp.sum(x, axis=0, keepdims=True)[None]
    sq_ref[...] += jnp.sum(x * x, axis=0, keepdims=True)[None]


def _normalize_kernel(x_ref, scale_ref, shift_ref, o_ref):
    """Pass 2: y = x * scale + shift with precomputed per-feature terms."""
    o_ref[...] = (x_ref[...].astype(jnp.float32) * scale_ref[...]
                  + shift_ref[...]).astype(o_ref.dtype)


# ----------------------------- wrappers -------------------------------------
def _pick_tile_d(d_pad, n_rows, itemsize, budget_bytes):
    # in + out, each double-buffered -> 4 live (n_rows, tile_d) blocks.
    for t in (512, 256, 128):
        if d_pad % t == 0 and 4 * n_rows * t * itemsize <= budget_bytes:
            return t
    return _LANES


def _seq_bn_single_pass(flat, gamma2, beta2, n_rows, d_pad, out_dtype):
    tile_d = _pick_tile_d(d_pad, n_rows, flat.dtype.itemsize,
                          _SINGLE_PASS_VMEM_BUDGET)
    # Keep >= 2 parallel grid steps where possible so v7x's two TensorCores
    # both get work (no effect on v5e/v6e; impossible only when d_pad == 128).
    while d_pad // tile_d < 2 and tile_d > _LANES:
        tile_d //= 2
    grid = (d_pad // tile_d,)

    return pl.pallas_call(
        _seqbn_fused_kernel,
        out_shape=jax.ShapeDtypeStruct((n_rows, d_pad), out_dtype),
        grid_spec=pltpu.PrefetchScalarGridSpec(
            num_scalar_prefetch=0,
            grid=grid,
            in_specs=[
                pl.BlockSpec((n_rows, tile_d), lambda j: (0, j)),
                pl.BlockSpec((1, tile_d), lambda j: (0, j)),
                pl.BlockSpec((1, tile_d), lambda j: (0, j)),
            ],
            out_specs=pl.BlockSpec((n_rows, tile_d), lambda j: (0, j)),
        ),
        compiler_params=pltpu.CompilerParams(
            dimension_semantics=("parallel",),
            vmem_limit_bytes=_VMEM_LIMIT),
    )(flat, gamma2, beta2)


def _seq_bn_two_pass(flat, gamma2, beta2, n_rows, d_pad, out_dtype):
    tile_d = next(t for t in (512, 256, 128) if d_pad % t == 0)
    rows_per_chunk = _round_up((n_rows + _N_CHUNKS - 1) // _N_CHUNKS, _TILE_N)
    n_pad = _N_CHUNKS * rows_per_chunk
    if n_pad != n_rows:
        flat = jnp.pad(flat, ((0, n_pad - n_rows), (0, 0)))
    tiles_per_chunk = rows_per_chunk // _TILE_N
    num_d = d_pad // tile_d

    # ---- Pass 1: per-feature sum / sum-of-squares (VMEM constant in N) -----
    psum, psq = pl.pallas_call(
        _stats_kernel,
        out_shape=(jax.ShapeDtypeStruct((_N_CHUNKS, 1, d_pad), jnp.float32),
                   jax.ShapeDtypeStruct((_N_CHUNKS, 1, d_pad), jnp.float32)),
        grid_spec=pltpu.PrefetchScalarGridSpec(
            num_scalar_prefetch=0,
            grid=(_N_CHUNKS, num_d, tiles_per_chunk),
            in_specs=[
                pl.BlockSpec((_TILE_N, tile_d),
                             lambda c, j, i: (c * tiles_per_chunk + i, j)),
            ],
            out_specs=(
                pl.BlockSpec((1, 1, tile_d), lambda c, j, i: (c, 0, j)),
                pl.BlockSpec((1, 1, tile_d), lambda c, j, i: (c, 0, j)),
            ),
        ),
        compiler_params=pltpu.CompilerParams(
            dimension_semantics=("parallel", "parallel", "arbitrary"),
            vmem_limit_bytes=_VMEM_LIMIT),
    )(flat)

    col_sum = jnp.sum(psum[:, 0, :], axis=0, keepdims=True)    # (1, d_pad)
    col_sq = jnp.sum(psq[:, 0, :], axis=0, keepdims=True)
    inv_n = 1.0 / n_rows                 # real rows; zero-padded rows add 0
    mean = col_sum * inv_n
    var = jnp.maximum(col_sq * inv_n - mean * mean, 0.0)        # biased var
    scale = gamma2 * lax.rsqrt(var + _EPS)
    shift = beta2 - mean * scale

    # ---- Pass 2: y = x * scale + shift --------------------------------------
    return pl.pallas_call(
        _normalize_kernel,
        out_shape=jax.ShapeDtypeStruct((n_pad, d_pad), out_dtype),
        grid_spec=pltpu.PrefetchScalarGridSpec(
            num_scalar_prefetch=0,
            # Row axis innermost so scale/shift blocks stay VMEM-resident.
            grid=(num_d, n_pad // _TILE_N),
            in_specs=[
                pl.BlockSpec((_TILE_N, tile_d), lambda j, i: (i, j)),
                pl.BlockSpec((1, tile_d), lambda j, i: (0, j)),
                pl.BlockSpec((1, tile_d), lambda j, i: (0, j)),
            ],
            out_specs=pl.BlockSpec((_TILE_N, tile_d), lambda j, i: (i, j)),
        ),
        compiler_params=pltpu.CompilerParams(
            dimension_semantics=("parallel", "parallel"),
            vmem_limit_bytes=_VMEM_LIMIT),
    )(flat, scale, shift)


@jax.jit
def seq_bn(x, gamma, beta):
    """SeqBN forward.  x: (..., d_model); gamma, beta: (d_model,)."""
    d_model = x.shape[-1]
    assert gamma.shape == (d_model,) and beta.shape == (d_model,)
    orig_shape = x.shape
    out_dtype = x.dtype

    flat = x.reshape(-1, d_model)
    n_rows = flat.shape[0]

    # Lane-dense feature axis: pad D to a multiple of 128 (unmasked stores).
    d_pad = _round_up(d_model, _LANES)
    if d_pad != d_model:
        flat = jnp.pad(flat, ((0, 0), (0, d_pad - d_model)))
        gamma = jnp.pad(gamma, (0, d_pad - d_model), constant_values=1.0)
        beta = jnp.pad(beta, (0, d_pad - d_model))
    gamma2 = gamma.reshape(1, d_pad).astype(jnp.float32)
    beta2 = beta.reshape(1, d_pad).astype(jnp.float32)

    if n_rows <= _SINGLE_PASS_MAX_ROWS:
        out = _seq_bn_single_pass(flat, gamma2, beta2, n_rows, d_pad, out_dtype)
    else:
        out = _seq_bn_two_pass(flat, gamma2, beta2, n_rows, d_pad, out_dtype)

    return out[:n_rows, :d_model].reshape(orig_shape)


# ----------------------------- reference / test ------------------------------
def _reference(x, gamma, beta):
    d = x.shape[-1]
    fx = x.reshape(-1, d).astype(jnp.float32)
    mean = jnp.mean(fx, axis=0, keepdims=True)
    var = jnp.mean((fx - mean) ** 2, axis=0, keepdims=True)
    y = (fx - mean) / jnp.sqrt(var + _EPS) * gamma + beta
    return y.reshape(x.shape).astype(x.dtype)


if __name__ == "__main__":
    key = jax.random.PRNGKey(0)
    k1, k2, k3, k4 = jax.random.split(key, 4)

    # --- Test 1: small shape, exercises the fused single-pass path ----------
    seq, batch, d_model = 8, 2, 32
    x = jax.random.normal(k1, (seq, batch, d_model), dtype=jnp.float32)
    gamma = 1.0 + 0.1 * jax.random.normal(k2, (d_model,), dtype=jnp.float32)
    beta = 0.1 * jax.random.normal(k3, (d_model,), dtype=jnp.float32)

    y = jax.block_until_ready(seq_bn(x, gamma, beta))
    y_ref = _reference(x, gamma, beta)
    assert y.shape == x.shape
    assert jnp.allclose(y, y_ref, atol=1e-5, rtol=1e-5), "single-pass mismatch"

    # --- Test 2: larger N, exercises the bounded two-pass path + padding ----
    seq2, batch2, d_model2 = 320, 17, 96     # N = 5440 > 4096, D % 128 != 0
    x2 = jax.random.normal(k4, (seq2, batch2, d_model2), dtype=jnp.float32)
    gamma_b = jnp.ones((d_model2,), dtype=jnp.float32)
    beta_b = jnp.zeros((d_model2,), dtype=jnp.float32)

    y2 = jax.block_until_ready(seq_bn(x2, gamma_b, beta_b))
    y2_ref = _reference(x2, gamma_b, beta_b)
    assert y2.shape == x2.shape
    assert jnp.allclose(y2, y2_ref, atol=1e-4, rtol=1e-4), "two-pass mismatch"

    print("KERNEL_OK")
</pallas_src>

<mosaic_0001>
module attributes {stable_mosaic.version = 11 : i64} {
  func.func @_seqbn_fused_kernel(%arg0: i32, %arg1: memref<16x128xf32, #tpu.memory_space<vmem>>, %arg2: memref<1x128xf32, #tpu.memory_space<vmem>>, %arg3: memref<1x128xf32, #tpu.memory_space<vmem>>, %arg4: memref<16x128xf32, #tpu.memory_space<vmem>>) attributes {dimension_semantics = [#tpu.dimension_semantics<parallel>], iteration_bounds = array<i64: 1>, scalar_prefetch = 0 : i64, scratch_operands = 0 : i64, tpu.core_type = #tpu.core_type<tc>, window_params = [{transform_indices = @transform_0, window_bounds = array<i64: 16, 128>}, {transform_indices = @transform_1, window_bounds = array<i64: 1, 128>}, {transform_indices = @transform_2, window_bounds = array<i64: 1, 128>}, {transform_indices = @transform_3, window_bounds = array<i64: 16, 128>}]} {
    %c0 = arith.constant 0 : index
    %c0_0 = arith.constant 0 : index
    %0 = vector.load %arg1[%c0, %c0_0] : memref<16x128xf32, #tpu.memory_space<vmem>>, vector<16x128xf32>
    %cst = arith.constant dense<0.000000e+00> : vector<128xf32>
    %1 = vector.multi_reduction <add>, %0, %cst [0] : vector<16x128xf32> to vector<128xf32>
    %2 = vector.shape_cast %1 : vector<128xf32> to vector<1x128xf32>
    %cst_1 = arith.constant 6.250000e-02 : f32
    %3 = vector.broadcast %cst_1 : f32 to vector<1x128xf32>
    %4 = arith.mulf %2, %3 : vector<1x128xf32>
    %5 = vector.broadcast %4 : vector<1x128xf32> to vector<16x128xf32>
    %6 = arith.subf %0, %5 : vector<16x128xf32>
    %7 = arith.mulf %6, %6 : vector<16x128xf32>
    %cst_2 = arith.constant dense<0.000000e+00> : vector<128xf32>
    %8 = vector.multi_reduction <add>, %7, %cst_2 [0] : vector<16x128xf32> to vector<128xf32>
    %9 = vector.shape_cast %8 : vector<128xf32> to vector<1x128xf32>
    %cst_3 = arith.constant 6.250000e-02 : f32
    %10 = vector.broadcast %cst_3 : f32 to vector<1x128xf32>
    %11 = arith.mulf %9, %10 : vector<1x128xf32>
    %c0_4 = arith.constant 0 : index
    %c0_5 = arith.constant 0 : index
    %12 = vector.load %arg2[%c0_4, %c0_5] : memref<1x128xf32, #tpu.memory_space<vmem>>, vector<1x128xf32>
    %cst_6 = arith.constant 9.99999974E-6 : f32
    %13 = vector.broadcast %cst_6 : f32 to vector<1x128xf32>
    %14 = arith.addf %11, %13 : vector<1x128xf32>
    %15 = math.rsqrt %14 : vector<1x128xf32>
    %16 = arith.mulf %12, %15 : vector<1x128xf32>
    %c0_7 = arith.constant 0 : index
    %c0_8 = arith.constant 0 : index
    %17 = vector.load %arg3[%c0_7, %c0_8] : memref<1x128xf32, #tpu.memory_space<vmem>>, vector<1x128xf32>
    %18 = arith.mulf %4, %16 : vector<1x128xf32>
    %19 = arith.subf %17, %18 : vector<1x128xf32>
    %20 = vector.broadcast %16 : vector<1x128xf32> to vector<16x128xf32>
    %21 = arith.mulf %0, %20 : vector<16x128xf32>
    %22 = vector.broadcast %19 : vector<1x128xf32> to vector<16x128xf32>
    %23 = arith.addf %21, %22 : vector<16x128xf32>
    %c0_9 = arith.constant 0 : index
    %c0_10 = arith.constant 0 : index
    %24 = vector.load %arg4[%c0_9, %c0_10] : memref<16x128xf32, #tpu.memory_space<vmem>>, vector<16x128xf32>
    tpu.vector_store %arg4[%c0_9, %c0_10], %23 {strides = array<i32>} : memref<16x128xf32, #tpu.memory_space<vmem>>, vector<16x128xf32>,
    return
  }
  func.func @transform_0(%arg0: i32) -> (i32, i32) {
    %c0_i32 = arith.constant 0 : i32
    %c0_i32_0 = arith.constant 0 : i32
    return %c0_i32, %arg0 : i32, i32
  }
  func.func @transform_1(%arg0: i32) -> (i32, i32) {
    %c0_i32 = arith.constant 0 : i32
    %c0_i32_0 = arith.constant 0 : i32
    return %c0_i32, %arg0 : i32, i32
  }
  func.func @transform_2(%arg0: i32) -> (i32, i32) {
    %c0_i32 = arith.constant 0 : i32
    %c0_i32_0 = arith.constant 0 : i32
    return %c0_i32, %arg0 : i32, i32
  }
  func.func @transform_3(%arg0: i32) -> (i32, i32) {
    %c0_i32 = arith.constant 0 : i32
    %c0_i32_0 = arith.constant 0 : i32
    return %c0_i32, %arg0 : i32, i32
  }
}

</mosaic_0001>

<llo_original>
// kernel: seq_bn.1
$region0: #{seq_bn.1}
  #allocation0 [shape = 'u32[]', space=smem, size = 0x4, offset = 0x4, fixed_abs, tag = 'smem constant byte address 0x4 - core index']
  #allocation1 [shape = 'u32[144,128]{1,0:T(1,128)}', space=vmem, size = 0x12000, scoped, tag = 'internal scratch']
  %s0 = inlined_call_operand.vmem [shape: f32[16,128], index: 0, kind: input, shape index: {}]
  %s1 = inlined_call_operand.vmem [shape: f32[1,128], index: 1, kind: input, shape index: {}]
  %s2 = inlined_call_operand.vmem [shape: f32[1,128], index: 2, kind: input, shape index: {}]
  %s3 = inlined_call_operand.hbm [shape: f32[16,128], index: 3, kind: output, shape index: {}]
  %s4 = sld [smem:[#allocation0]]
  $region22: #{seq_bn.1} parent=0
    _
  %s6 = ssub.s32 1, %s4
  %s7 = scalar_select 0, %s6, %s4
  $region1: #{seq_bn.1} parent=0
    #allocation2 [shape = 'u8[8192]{0}', space=vmem, size = 0x2000, scoped, tag = 'output window, operand 0, single buffered']
    #allocation3 [shape = 's32[1]{0}', space=sflag, size = 0x4, scoped, tag = 'scoped memory for seq_bn.1']
    %8 = vsyncpa [#allocation3], 0
    // Predicated region
    $region2: #{seq_bn.1} parent=1 // pred_check
      _
    $region3: #{seq_bn.1} parent=1 // pred_check_branch
      %10 = sbr.rel (0) target = $region5
    $region4: #{seq_bn.1} parent=1 // pred_region
      _
    $region5: #{seq_bn.1} parent=1 // pred_fallthru
      _
    // Predicated region
    $region6: #{seq_bn.1} parent=1 // pred_check
      _
    $region7: #{seq_bn.1} parent=1 // pred_check_branch
      %12 = sbr.rel (0) target = $region9
    $region8: #{seq_bn.1} parent=1 // pred_region
      _
    $region9: #{seq_bn.1} parent=1 // pred_fallthru
      _
    // Predicated region
    $region10: #{seq_bn.1} parent=1 // pred_check
      _
    $region11: #{seq_bn.1} parent=1 // pred_check_branch
      %14 = sbr.rel (0) target = $region13
    $region12: #{seq_bn.1} parent=1 // pred_region
      _
    $region13: #{seq_bn.1} parent=1 // pred_fallthru
      _
    %v15 = vld [vmem:[%s0] sm:$0xff]
    %v16 = vld [vmem:[%s0 + $0x8] sm:$0xff]
    %v17 = vadd.f32 %v15, %v16
    %v18 = vrot.slane %v17, 4
    %v19 = vadd.f32 %v17, %v18
    %v20 = vrot.slane %v19, 2
    %v21 = vadd.f32 %v19, %v20
    %v22 = vrot.slane %v21, 1
    %v23 = vadd.f32 %v21, %v22
    %v24 = vmul.f32 %v23, 0.0625
    %v25 = vsub.f32 %v15, %v24
    %v26 = vsub.f32 %v16, %v24
    %v27 = vmul.f32 %v25, %v25
    %v28 = vmul.f32 %v26, %v26
    %v29 = vadd.f32 %v27, %v28
    %v30 = vrot.slane %v29, 4
    %v31 = vadd.f32 %v29, %v30
    %v32 = vrot.slane %v31, 2
    %v33 = vadd.f32 %v31, %v32
    %v34 = vrot.slane %v33, 1
    %v35 = vadd.f32 %v33, %v34
    %v36 = vmul.f32 %v35, 0.0625
    %v37 = vld [vmem:[%s1] sm:$0x1]
    %v38 = vadd.f32 %v36, 1e-05
    %v39 = vrsqrt.pop %v38
    %v40 = vmul.f32 %v37, %v39
    %v41 = vld [vmem:[%s2] sm:$0x1]
    %v42 = vmul.f32 %v24, %v40
    %v43 = vsub.f32 %v41, %v42
    %v45 = vlaneseq
    %v46 = vshrl.u32 %v45, 7
    %v47 = vsub.s32 0, %v46
    %v48 = vrot.slane %v40, %v47
    %v50 = vmul.f32 %v15, %v48
    %v51 = vmul.f32 %v16, %v48
    %v53 = vlaneseq
    %v54 = vshrl.u32 %v53, 7
    %v55 = vsub.s32 0, %v54
    %v56 = vrot.slane %v43, %v55
    %v58 = vadd.f32 %v50, %v56
    %v59 = vadd.f32 %v51, %v56
    %60 = vst [vmem:[#allocation2] sm:$0xff] %v58
    %61 = vst [vmem:[#allocation2 + $0x8] sm:$0xff] %v59
    // Predicated region
    $region14: #{seq_bn.1} parent=1 // pred_check
      _
    $region15: #{seq_bn.1} parent=1 // pred_check_branch
      %63 = sbr.rel (0) target = $region17
    $region16: #{seq_bn.1} parent=1 // pred_region
      %s65 = ssub.s32 256, 256
      %66 = vsyncadd [#allocation3], %s65
      %s67 = sshll.u32 [#allocation2], 4
      %s68 = int_to_ptr.vmem [resolvable:$true] %s67
      %73 = dma.vmem_to_hbm [thread:$0]  %s68, 256, %s3, [#allocation3], 128, 128, 8
    $region17: #{seq_bn.1} parent=1 // pred_fallthru
      _
    // Predicated region
    $region18: #{seq_bn.1} parent=1 // pred_check
      _
    $region19: #{seq_bn.1} parent=1 // pred_check_branch
      %75 = sbr.rel (0) target = $region21
    $region20: #{seq_bn.1} parent=1 // pred_region
      %76 = dma.done [#allocation3], 256
    $region21: #{seq_bn.1} parent=1 // pred_fallthru
      _
    %77 = vsyncpa [#allocation3], 1

</llo_original>
